<compile_context>
chip_gen: v5e
topology: v5e:2x2
jax: 0.10.0
libtpu: 0.0.40
codegen_flags: <defaults>
</compile_context>

<pallas_src>
import functools
import math

import jax
import jax.numpy as jnp
from jax.experimental import pallas as pl
from jax.experimental.pallas import tpu as pltpu

_VMEM_LIMIT = 48 * 1024 * 1024          # fits v7x (64 MiB physical) with headroom
_MASK_VALUE = -1e30                      # finite causal mask value (no inf-inf NaN risk)


def _pick_tile(dim, candidates):
    """Largest candidate tile that divides `dim`, else the full dim (small-shape fallback)."""
    for c in candidates:
        if dim >= c and dim % c == 0:
            return c
    return dim


# ---------------------------------------------------------------------------
# Tiled projection matmul:  out = x @ w_t + b      (bf16 MXU inputs, f32 accum)
# ---------------------------------------------------------------------------
def _proj_kernel(x_ref, w_ref, b_ref, o_ref, acc_ref, *, compute_dtype):
    @pl.when(pl.program_id(2) == 0)
    def _init():
        acc_ref[...] = jnp.zeros_like(acc_ref)

    acc_ref[...] += jnp.dot(x_ref[...].astype(compute_dtype),
                            w_ref[...].astype(compute_dtype),
                            preferred_element_type=jnp.float32)

    @pl.when(pl.program_id(2) == pl.num_programs(2) - 1)
    def _finalize():
        o_ref[...] = (acc_ref[...] + b_ref[...]).astype(o_ref.dtype)


def _projection(x2, w_t, b, *, compute_dtype):
    M, K = x2.shape
    _, Nout = w_t.shape
    tm = _pick_tile(M, (256, 128))
    tn = _pick_tile(Nout, (512, 256, 128))
    tk = _pick_tile(K, (512, 256, 128))
    grid = (M // tm, Nout // tn, K // tk)

    cost = pl.CostEstimate(
        flops=2 * M * Nout * K,
        transcendentals=0,
        bytes_accessed=4 * (M * K + K * Nout + M * Nout))

    return pl.pallas_call(
        functools.partial(_proj_kernel, compute_dtype=compute_dtype),
        out_shape=jax.ShapeDtypeStruct((M, Nout), x2.dtype),
        grid_spec=pltpu.PrefetchScalarGridSpec(
            num_scalar_prefetch=0,
            grid=grid,
            in_specs=[pl.BlockSpec((tm, tk), lambda i, j, k: (i, k)),
                      pl.BlockSpec((tk, tn), lambda i, j, k: (k, j)),
                      pl.BlockSpec((1, tn), lambda i, j, k: (0, j))],
            out_specs=pl.BlockSpec((tm, tn), lambda i, j, k: (i, j)),
            scratch_shapes=[pltpu.VMEM((tm, tn), jnp.float32)]),
        compiler_params=pltpu.CompilerParams(
            dimension_semantics=("parallel", "parallel", "arbitrary"),
            vmem_limit_bytes=_VMEM_LIMIT),
        cost_estimate=cost,
    )(x2, w_t, b)


# ---------------------------------------------------------------------------
# Flash attention core (online softmax over kv blocks)
# ---------------------------------------------------------------------------
def _flash_attn_kernel(q_ref, k_ref, v_ref, o_ref, m_sc, l_sc, acc_sc,
                       *, scale, causal, block_q, block_k, compute_dtype):
    qi = pl.program_id(1)
    ki = pl.program_id(2)

    @pl.when(ki == 0)
    def _init():
        m_sc[...] = jnp.full_like(m_sc, -jnp.inf)
        l_sc[...] = jnp.zeros_like(l_sc)
        acc_sc[...] = jnp.zeros_like(acc_sc)

    def _compute():
        # Fold 1/sqrt(hd) into q (a (tq,hd) multiply instead of scaling (tq,tk) scores).
        q = (q_ref[0] * scale).astype(compute_dtype)                  # (tq, hd)
        k = k_ref[0].astype(compute_dtype)                            # (tk, hd)
        # q @ k^T without materializing a transpose (contract on the hd axis of both).
        s = jax.lax.dot_general(q, k, (((1,), (1,)), ((), ())),
                                preferred_element_type=jnp.float32)   # (tq, tk) f32

        if causal:
            row = qi * block_q + jax.lax.broadcasted_iota(jnp.int32, s.shape, 0)
            col = ki * block_k + jax.lax.broadcasted_iota(jnp.int32, s.shape, 1)
            s = jnp.where(col <= row, s, _MASK_VALUE)

        m_prev = m_sc[...]                                            # (tq, 1)
        m_new = jnp.maximum(m_prev, jnp.max(s, axis=-1, keepdims=True))
        alpha = jnp.exp(m_prev - m_new)
        p = jnp.exp(s - m_new)                                        # (tq, tk) f32
        l_sc[...] = alpha * l_sc[...] + jnp.sum(p, axis=-1, keepdims=True)
        acc_sc[...] = alpha * acc_sc[...] + jnp.dot(
            p.astype(compute_dtype), v_ref[0].astype(compute_dtype),
            preferred_element_type=jnp.float32)
        m_sc[...] = m_new

    if causal:
        # Skip kv blocks that lie entirely above the diagonal for this q block.
        @pl.when(ki * block_k <= qi * block_q + block_q - 1)
        def _():
            _compute()
    else:
        _compute()

    @pl.when(ki == pl.num_programs(2) - 1)
    def _finalize():
        # Deferred softmax normalization: one (tq, hd) multiply, reciprocal on the EUP slot.
        inv_l = pl.reciprocal(l_sc[...], approx=True)
        o_ref[0] = (acc_sc[...] * inv_l).astype(o_ref.dtype)


def _flash_attention_core(q, k, v, *, causal, compute_dtype):
    BH, N, hd = q.shape
    scale = 1.0 / math.sqrt(hd)
    block_q = _pick_tile(N, (256, 128))
    block_k = _pick_tile(N, (512, 256, 128))
    grid = (BH, N // block_q, N // block_k)

    cost = pl.CostEstimate(
        flops=4 * BH * N * N * hd,
        transcendentals=BH * N * N,
        bytes_accessed=4 * 4 * BH * N * hd)

    kernel = functools.partial(_flash_attn_kernel, scale=scale, causal=causal,
                               block_q=block_q, block_k=block_k,
                               compute_dtype=compute_dtype)
    return pl.pallas_call(
        kernel,
        out_shape=jax.ShapeDtypeStruct((BH, N, hd), q.dtype),
        grid_spec=pltpu.PrefetchScalarGridSpec(
            num_scalar_prefetch=0,
            grid=grid,
            in_specs=[pl.BlockSpec((1, block_q, hd), lambda b, qi, ki: (b, qi, 0)),
                      pl.BlockSpec((1, block_k, hd), lambda b, qi, ki: (b, ki, 0)),
                      pl.BlockSpec((1, block_k, hd), lambda b, qi, ki: (b, ki, 0))],
            out_specs=pl.BlockSpec((1, block_q, hd), lambda b, qi, ki: (b, qi, 0)),
            scratch_shapes=[pltpu.VMEM((block_q, 1), jnp.float32),   # running max m
                            pltpu.VMEM((block_q, 1), jnp.float32),   # running sum l
                            pltpu.VMEM((block_q, hd), jnp.float32)]),  # unnormalized acc
        compiler_params=pltpu.CompilerParams(
            dimension_semantics=("parallel", "parallel", "arbitrary"),
            vmem_limit_bytes=_VMEM_LIMIT),
        cost_estimate=cost,
    )(q, k, v)


# ---------------------------------------------------------------------------
# Full forward (matches FlashAttention.forward)
# ---------------------------------------------------------------------------
def flash_attention(x, params, *, num_heads, causal=False, compute_dtype=jnp.bfloat16):
    """x: (B, N, C); params hold pre-transposed weights / (1, D) biases."""
    B, N, C = x.shape
    H = num_heads
    hd = C // H

    # 1) fused QKV projection (one (C, 3C) matmul for q, k and v together)
    qkv = _projection(x.reshape(B * N, C), params["wqkv_t"], params["bqkv"],
                      compute_dtype=compute_dtype)                    # (B*N, 3C)

    # wrapper-side layout plumbing (same reshape/permute the PyTorch module does)
    qkv = qkv.reshape(B, N, 3, H, hd).transpose(2, 0, 3, 1, 4)        # (3, B, H, N, hd)
    q = qkv[0].reshape(B * H, N, hd)
    k = qkv[1].reshape(B * H, N, hd)
    v = qkv[2].reshape(B * H, N, hd)

    # 2) flash attention (online softmax, head axis folded into grid dim 0)
    ctx = _flash_attention_core(q, k, v, causal=causal, compute_dtype=compute_dtype)

    # head concat -> (B*N, C), lane-dense for the output-projection kernel
    ctx = ctx.reshape(B, H, N, hd).transpose(0, 2, 1, 3).reshape(B * N, C)

    # 3) output projection
    out = _projection(ctx, params["wo_t"], params["bo"], compute_dtype=compute_dtype)
    return out.reshape(B, N, C)


def init_params(key, embed_dim):
    """PyTorch-style Linear init; weights pre-transposed / biases pre-reshaped ONCE."""
    kqw, kqb, kow, kob = jax.random.split(key, 4)
    bound = 1.0 / math.sqrt(embed_dim)
    wqkv = jax.random.uniform(kqw, (3 * embed_dim, embed_dim), jnp.float32, -bound, bound)
    bqkv = jax.random.uniform(kqb, (3 * embed_dim,), jnp.float32, -bound, bound)
    wo = jax.random.uniform(kow, (embed_dim, embed_dim), jnp.float32, -bound, bound)
    bo = jax.random.uniform(kob, (embed_dim,), jnp.float32, -bound, bound)
    return {
        "wqkv_t": jnp.transpose(wqkv),                 # (C, 3C)
        "bqkv": bqkv.reshape(1, 3 * embed_dim),        # (1, 3C)
        "wo_t": jnp.transpose(wo),                     # (C, C)
        "bo": bo.reshape(1, embed_dim),                # (1, C)
    }


def flash_attention_ref(x, params, *, num_heads, causal=False):
    """Pure-JAX f32 reference mirroring the intended PyTorch forward."""
    B, N, C = x.shape
    hd = C // num_heads
    qkv = x.reshape(B * N, C) @ params["wqkv_t"] + params["bqkv"]
    qkv = qkv.reshape(B, N, 3, num_heads, hd).transpose(2, 0, 3, 1, 4)   # (3, B, H, N, hd)
    q, k, v = qkv[0], qkv[1], qkv[2]
    s = jnp.einsum('bhnd,bhmd->bhnm', q, k) / math.sqrt(hd)
    if causal:
        mask = jnp.tril(jnp.ones((N, N), dtype=bool))
        s = jnp.where(mask[None, None], s, -jnp.inf)
    p = jax.nn.softmax(s, axis=-1)
    ctx = jnp.einsum('bhnm,bhmd->bhnd', p, v)
    ctx = ctx.transpose(0, 2, 1, 3).reshape(B * N, C)
    out = ctx @ params["wo_t"] + params["bo"]
    return out.reshape(B, N, C)


if __name__ == "__main__":
    batch, seq_len, embed_dim, num_heads = 2, 8, 32, 4

    key = jax.random.PRNGKey(0)
    k_params, k_x = jax.random.split(key)
    params = init_params(k_params, embed_dim)
    x = jax.random.normal(k_x, (batch, seq_len, embed_dim), jnp.float32)

    # Performance config: bf16 MXU inputs, f32 accumulation (per-dtype tolerance).
    fwd_bf16 = jax.jit(functools.partial(flash_attention, num_heads=num_heads,
                                         causal=False, compute_dtype=jnp.bfloat16))
    out_bf16 = jax.block_until_ready(fwd_bf16(x, params))
    assert out_bf16.shape == (batch, seq_len, embed_dim)
    assert bool(jnp.all(jnp.isfinite(out_bf16)))

    ref = flash_attention_ref(x, params, num_heads=num_heads, causal=False)
    err_bf16 = float(jnp.max(jnp.abs(out_bf16 - ref)))
    assert err_bf16 < 5e-2, f"bf16 kernel/reference mismatch: max abs err {err_bf16}"

    # Numerics config: f32 MXU inputs, tight tolerance (catches algorithmic bugs).
    fwd_f32 = jax.jit(functools.partial(flash_attention, num_heads=num_heads,
                                        causal=False, compute_dtype=jnp.float32))
    out_f32 = jax.block_until_ready(fwd_f32(x, params))
    err_f32 = float(jnp.max(jnp.abs(out_f32 - ref)))
    assert err_f32 < 5e-3, f"f32 kernel/reference mismatch: max abs err {err_f32}"

    # Causal path (block-skip + diagonal mask), f32 numerics.
    fwd_causal = jax.jit(functools.partial(flash_attention, num_heads=num_heads,
                                           causal=True, compute_dtype=jnp.float32))
    out_c = jax.block_until_ready(fwd_causal(x, params))
    ref_c = flash_attention_ref(x, params, num_heads=num_heads, causal=True)
    err_c = float(jnp.max(jnp.abs(out_c - ref_c)))
    assert err_c < 5e-3, f"causal kernel/reference mismatch: max abs err {err_c}"

    print("KERNEL_OK")
</pallas_src>

<mosaic_0001>
module attributes {stable_mosaic.version = 11 : i64} {
  func.func @_proj_kernel(%arg0: i32, %arg1: i32, %arg2: i32, %arg3: memref<16x32xf32, #tpu.memory_space<vmem>>, %arg4: memref<32x96xf32, #tpu.memory_space<vmem>>, %arg5: memref<1x96xf32, #tpu.memory_space<vmem>>, %arg6: memref<16x96xf32, #tpu.memory_space<vmem>>, %arg7: memref<16x96xf32, #tpu.memory_space<vmem>>) attributes {dimension_semantics = [#tpu.dimension_semantics<parallel>, #tpu.dimension_semantics<parallel>, #tpu.dimension_semantics<arbitrary>], iteration_bounds = array<i64: 1, 1, 1>, scalar_prefetch = 0 : i64, scratch_operands = 1 : i64, tpu.core_type = #tpu.core_type<tc>, window_params = [{transform_indices = @transform_0, window_bounds = array<i64: 16, 32>}, {transform_indices = @transform_1, window_bounds = array<i64: 32, 96>}, {transform_indices = @transform_2, window_bounds = array<i64: 1, 96>}, {transform_indices = @transform_3, window_bounds = array<i64: 16, 96>}]} {
    %c0_i32 = arith.constant 0 : i32
    %0 = arith.cmpi eq, %arg2, %c0_i32 : i32
    %1 = arith.extui %0 : i1 to i32
    %c0_i32_0 = arith.constant 0 : i32
    %2 = arith.cmpi ne, %1, %c0_i32_0 : i32
    scf.if %2 {
      %cst_10 = arith.constant 0.000000e+00 : f32
      %14 = vector.broadcast %cst_10 : f32 to vector<16x96xf32>
      %c0_11 = arith.constant 0 : index
      %c0_12 = arith.constant 0 : index
      %15 = vector.load %arg7[%c0_11, %c0_12] : memref<16x96xf32, #tpu.memory_space<vmem>>, vector<16x96xf32>
      tpu.vector_store %arg7[%c0_11, %c0_12], %14 {strides = array<i32>} : memref<16x96xf32, #tpu.memory_space<vmem>>, vector<16x96xf32>,
    } else {
    }
    %c0 = arith.constant 0 : index
    %c0_1 = arith.constant 0 : index
    %3 = vector.load %arg7[%c0, %c0_1] : memref<16x96xf32, #tpu.memory_space<vmem>>, vector<16x96xf32>
    %c0_2 = arith.constant 0 : index
    %c0_3 = arith.constant 0 : index
    %4 = vector.load %arg3[%c0_2, %c0_3] : memref<16x32xf32, #tpu.memory_space<vmem>>, vector<16x32xf32>
    %5 = arith.truncf %4 : vector<16x32xf32> to vector<16x32xbf16>
    %c0_4 = arith.constant 0 : index
    %c0_5 = arith.constant 0 : index
    %6 = vector.load %arg4[%c0_4, %c0_5] : memref<32x96xf32, #tpu.memory_space<vmem>>, vector<32x96xf32>
    %7 = arith.truncf %6 : vector<32x96xf32> to vector<32x96xbf16>
    %cst = arith.constant dense<0.000000e+00> : vector<16x96xf32>
    %8 = tpu.matmul %5, %7, %cst {dimension_numbers = #tpu.dot_dimension_numbers<[1], [0], [0], [1], [0, 0, 1, 1], [], []>} : vector<16x32xbf16>, vector<32x96xbf16>, vector<16x96xf32> -> vector<16x96xf32>
    %9 = arith.addf %3, %8 : vector<16x96xf32>
    %c0_6 = arith.constant 0 : index
    %c0_7 = arith.constant 0 : index
    %10 = vector.load %arg7[%c0_6, %c0_7] : memref<16x96xf32, #tpu.memory_space<vmem>>, vector<16x96xf32>
    tpu.vector_store %arg7[%c0_6, %c0_7], %9 {strides = array<i32>} : memref<16x96xf32, #tpu.memory_space<vmem>>, vector<16x96xf32>,
    %c0_i32_8 = arith.constant 0 : i32
    %11 = arith.cmpi eq, %arg2, %c0_i32_8 : i32
    %12 = arith.extui %11 : i1 to i32
    %c0_i32_9 = arith.constant 0 : i32
    %13 = arith.cmpi ne, %12, %c0_i32_9 : i32
    scf.if %13 {
      %c0_10 = arith.constant 0 : index
      %c0_11 = arith.constant 0 : index
      %14 = vector.load %arg7[%c0_10, %c0_11] : memref<16x96xf32, #tpu.memory_space<vmem>>, vector<16x96xf32>
      %c0_12 = arith.constant 0 : index
      %c0_13 = arith.constant 0 : index
      %15 = vector.load %arg5[%c0_12, %c0_13] : memref<1x96xf32, #tpu.memory_space<vmem>>, vector<1x96xf32>
      %16 = vector.broadcast %15 : vector<1x96xf32> to vector<16x96xf32>
      %17 = arith.addf %14, %16 : vector<16x96xf32>
      %c0_14 = arith.constant 0 : index
      %c0_15 = arith.constant 0 : index
      %18 = vector.load %arg6[%c0_14, %c0_15] : memref<16x96xf32, #tpu.memory_space<vmem>>, vector<16x96xf32>
      tpu.vector_store %arg6[%c0_14, %c0_15], %17 {strides = array<i32>} : memref<16x96xf32, #tpu.memory_space<vmem>>, vector<16x96xf32>,
    } else {
    }
    return
  }
  func.func @transform_0(%arg0: i32, %arg1: i32, %arg2: i32) -> (i32, i32) {
    %c0_i32 = arith.constant 0 : i32
    return %arg0, %arg2 : i32, i32
  }
  func.func @transform_1(%arg0: i32, %arg1: i32, %arg2: i32) -> (i32, i32) {
    %c0_i32 = arith.constant 0 : i32
    return %arg2, %arg1 : i32, i32
  }
  func.func @transform_2(%arg0: i32, %arg1: i32, %arg2: i32) -> (i32, i32) {
    %c0_i32 = arith.constant 0 : i32
    %c0_i32_0 = arith.constant 0 : i32
    return %c0_i32, %arg1 : i32, i32
  }
  func.func @transform_3(%arg0: i32, %arg1: i32, %arg2: i32) -> (i32, i32) {
    %c0_i32 = arith.constant 0 : i32
    return %arg0, %arg1 : i32, i32
  }
}

module attributes {stable_mosaic.version = 11 : i64} {
  func.func @_flash_attn_kernel(%arg0: i32, %arg1: i32, %arg2: i32, %arg3: memref<1x8x8xf32, #tpu.memory_space<vmem>>, %arg4: memref<1x8x8xf32, #tpu.memory_space<vmem>>, %arg5: memref<1x8x8xf32, #tpu.memory_space<vmem>>, %arg6: memref<1x8x8xf32, #tpu.memory_space<vmem>>, %arg7: memref<8x1xf32, #tpu.memory_space<vmem>>, %arg8: memref<8x1xf32, #tpu.memory_space<vmem>>, %arg9: memref<8x8xf32, #tpu.memory_space<vmem>>) attributes {dimension_semantics = [#tpu.dimension_semantics<parallel>, #tpu.dimension_semantics<parallel>, #tpu.dimension_semantics<arbitrary>], iteration_bounds = array<i64: 8, 1, 1>, scalar_prefetch = 0 : i64, scratch_operands = 3 : i64, tpu.core_type = #tpu.core_type<tc>, window_params = [{transform_indices = @transform_0, window_bounds = array<i64: 1, 8, 8>}, {transform_indices = @transform_1, window_bounds = array<i64: 1, 8, 8>}, {transform_indices = @transform_2, window_bounds = array<i64: 1, 8, 8>}, {transform_indices = @transform_3, window_bounds = array<i64: 1, 8, 8>}]} {
    %c0_i32 = arith.constant 0 : i32
    %0 = arith.cmpi eq, %arg2, %c0_i32 : i32
    %1 = arith.extui %0 : i1 to i32
    %c0_i32_0 = arith.constant 0 : i32
    %2 = arith.cmpi ne, %1, %c0_i32_0 : i32
    scf.if %2 {
      %cst_27 = arith.constant 0xFF800000 : f32
      %41 = vector.broadcast %cst_27 : f32 to vector<8x1xf32>
      %c0_28 = arith.constant 0 : index
      %c0_29 = arith.constant 0 : index
      %42 = vector.load %arg7[%c0_28, %c0_29] : memref<8x1xf32, #tpu.memory_space<vmem>>, vector<8x1xf32>
      tpu.vector_store %arg7[%c0_28, %c0_29], %41 {strides = array<i32>} : memref<8x1xf32, #tpu.memory_space<vmem>>, vector<8x1xf32>,
      %cst_30 = arith.constant 0.000000e+00 : f32
      %43 = vector.broadcast %cst_30 : f32 to vector<8x1xf32>
      %c0_31 = arith.constant 0 : index
      %c0_32 = arith.constant 0 : index
      %44 = vector.load %arg8[%c0_31, %c0_32] : memref<8x1xf32, #tpu.memory_space<vmem>>, vector<8x1xf32>
      tpu.vector_store %arg8[%c0_31, %c0_32], %43 {strides = array<i32>} : memref<8x1xf32, #tpu.memory_space<vmem>>, vector<8x1xf32>,
      %cst_33 = arith.constant 0.000000e+00 : f32
      %45 = vector.broadcast %cst_33 : f32 to vector<8x8xf32>
      %c0_34 = arith.constant 0 : index
      %c0_35 = arith.constant 0 : index
      %46 = vector.load %arg9[%c0_34, %c0_35] : memref<8x8xf32, #tpu.memory_space<vmem>>, vector<8x8xf32>
      tpu.vector_store %arg9[%c0_34, %c0_35], %45 {strides = array<i32>} : memref<8x8xf32, #tpu.memory_space<vmem>>, vector<8x8xf32>,
    } else {
    }
    %c0 = arith.constant 0 : index
    %c0_1 = arith.constant 0 : index
    %c0_2 = arith.constant 0 : index
    %3 = vector.load %arg3[%c0, %c0_1, %c0_2] : memref<1x8x8xf32, #tpu.memory_space<vmem>>, vector<1x8x8xf32>
    %4 = vector.shape_cast %3 : vector<1x8x8xf32> to vector<8x8xf32>
    %cst = arith.constant 0.353553385 : f32
    %5 = vector.broadcast %cst : f32 to vector<8x8xf32>
    %6 = arith.mulf %4, %5 : vector<8x8xf32>
    %7 = arith.truncf %6 : vector<8x8xf32> to vector<8x8xbf16>
    %c0_3 = arith.constant 0 : index
    %c0_4 = arith.constant 0 : index
    %c0_5 = arith.constant 0 : index
    %8 = vector.load %arg4[%c0_3, %c0_4, %c0_5] : memref<1x8x8xf32, #tpu.memory_space<vmem>>, vector<1x8x8xf32>
    %9 = vector.shape_cast %8 : vector<1x8x8xf32> to vector<8x8xf32>
    %10 = arith.truncf %9 : vector<8x8xf32> to vector<8x8xbf16>
    %cst_6 = arith.constant dense<0.000000e+00> : vector<8x8xf32>
    %11 = tpu.matmul %7, %10, %cst_6 {dimension_numbers = #tpu.dot_dimension_numbers<[1], [1], [0], [0], [0, 0, 1, 0], [], []>} : vector<8x8xbf16>, vector<8x8xbf16>, vector<8x8xf32> -> vector<8x8xf32>
    %c0_7 = arith.constant 0 : index
    %c0_8 = arith.constant 0 : index
    %12 = vector.load %arg7[%c0_7, %c0_8] : memref<8x1xf32, #tpu.memory_space<vmem>>, vector<8x1xf32>
    %cst_9 = arith.constant dense<0xFF800000> : vector<8xf32>
    %13 = vector.multi_reduction <maximumf>, %11, %cst_9 [1] : vector<8x8xf32> to vector<8xf32>
    %14 = vector.shape_cast %13 : vector<8xf32> to vector<8x1xf32>
    %15 = arith.maximumf %12, %14 : vector<8x1xf32>
    %16 = arith.subf %12, %15 : vector<8x1xf32>
    %17 = math.exp %16 : vector<8x1xf32>
    %18 = vector.broadcast %15 : vector<8x1xf32> to vector<8x8xf32>
    %19 = arith.subf %11, %18 : vector<8x8xf32>
    %20 = math.exp %19 : vector<8x8xf32>
    %c0_10 = arith.constant 0 : index
    %c0_11 = arith.constant 0 : index
    %21 = vector.load %arg8[%c0_10, %c0_11] : memref<8x1xf32, #tpu.memory_space<vmem>>, vector<8x1xf32>
    %22 = arith.mulf %17, %21 : vector<8x1xf32>
    %cst_12 = arith.constant dense<0.000000e+00> : vector<8xf32>
    %23 = vector.multi_reduction <add>, %20, %cst_12 [1] : vector<8x8xf32> to vector<8xf32>
    %24 = vector.shape_cast %23 : vector<8xf32> to vector<8x1xf32>
    %25 = arith.addf %22, %24 : vector<8x1xf32>
    %c0_13 = arith.constant 0 : index
    %c0_14 = arith.constant 0 : index
    %26 = vector.load %arg8[%c0_13, %c0_14] : memref<8x1xf32, #tpu.memory_space<vmem>>, vector<8x1xf32>
    tpu.vector_store %arg8[%c0_13, %c0_14], %25 {strides = array<i32>} : memref<8x1xf32, #tpu.memory_space<vmem>>, vector<8x1xf32>,
    %c0_15 = arith.constant 0 : index
    %c0_16 = arith.constant 0 : index
    %27 = vector.load %arg9[%c0_15, %c0_16] : memref<8x8xf32, #tpu.memory_space<vmem>>, vector<8x8xf32>
    %28 = vector.broadcast %17 : vector<8x1xf32> to vector<8x8xf32>
    %29 = arith.mulf %28, %27 : vector<8x8xf32>
    %30 = arith.truncf %20 : vector<8x8xf32> to vector<8x8xbf16>
    %c0_17 = arith.constant 0 : index
    %c0_18 = arith.constant 0 : index
    %c0_19 = arith.constant 0 : index
    %31 = vector.load %arg5[%c0_17, %c0_18, %c0_19] : memref<1x8x8xf32, #tpu.memory_space<vmem>>, vector<1x8x8xf32>
    %32 = vector.shape_cast %31 : vector<1x8x8xf32> to vector<8x8xf32>
    %33 = arith.truncf %32 : vector<8x8xf32> to vector<8x8xbf16>
    %cst_20 = arith.constant dense<0.000000e+00> : vector<8x8xf32>
    %34 = tpu.matmul %30, %33, %cst_20 {dimension_numbers = #tpu.dot_dimension_numbers<[1], [0], [0], [1], [0, 0, 1, 1], [], []>} : vector<8x8xbf16>, vector<8x8xbf16>, vector<8x8xf32> -> vector<8x8xf32>
    %35 = arith.addf %29, %34 : vector<8x8xf32>
    %c0_21 = arith.constant 0 : index
    %c0_22 = arith.constant 0 : index
    %36 = vector.load %arg9[%c0_21, %c0_22] : memref<8x8xf32, #tpu.memory_space<vmem>>, vector<8x8xf32>
    tpu.vector_store %arg9[%c0_21, %c0_22], %35 {strides = array<i32>} : memref<8x8xf32, #tpu.memory_space<vmem>>, vector<8x8xf32>,
    %c0_23 = arith.constant 0 : index
    %c0_24 = arith.constant 0 : index
    %37 = vector.load %arg7[%c0_23, %c0_24] : memref<8x1xf32, #tpu.memory_space<vmem>>, vector<8x1xf32>
    tpu.vector_store %arg7[%c0_23, %c0_24], %15 {strides = array<i32>} : memref<8x1xf32, #tpu.memory_space<vmem>>, vector<8x1xf32>,
    %c0_i32_25 = arith.constant 0 : i32
    %38 = arith.cmpi eq, %arg2, %c0_i32_25 : i32
    %39 = arith.extui %38 : i1 to i32
    %c0_i32_26 = arith.constant 0 : i32
    %40 = arith.cmpi ne, %39, %c0_i32_26 : i32
    scf.if %40 {
      %c0_27 = arith.constant 0 : index
      %c0_28 = arith.constant 0 : index
      %41 = vector.load %arg8[%c0_27, %c0_28] : memref<8x1xf32, #tpu.memory_space<vmem>>, vector<8x1xf32>
      %42 = tpu.reciprocal %41 {approx = true} : vector<8x1xf32> -> vector<8x1xf32>
      %c0_29 = arith.constant 0 : index
      %c0_30 = arith.constant 0 : index
      %43 = vector.load %arg9[%c0_29, %c0_30] : memref<8x8xf32, #tpu.memory_space<vmem>>, vector<8x8xf32>
      %44 = vector.broadcast %42 : vector<8x1xf32> to vector<8x8xf32>
      %45 = arith.mulf %43, %44 : vector<8x8xf32>
      %c0_31 = arith.constant 0 : index
      %c0_32 = arith.constant 0 : index
      %c0_33 = arith.constant 0 : index
      %46 = vector.load %arg6[%c0_31, %c0_32, %c0_33] : memref<1x8x8xf32, #tpu.memory_space<vmem>>, vector<1x8x8xf32>
      %47 = vector.shape_cast %46 : vector<1x8x8xf32> to vector<8x8xf32>
      %48 = vector.shape_cast %45 : vector<8x8xf32> to vector<1x8x8xf32>
      tpu.vector_store %arg6[%c0_31, %c0_32, %c0_33], %48 {strides = array<i32>} : memref<1x8x8xf32, #tpu.memory_space<vmem>>, vector<1x8x8xf32>,
    } else {
    }
    return
  }
  func.func @transform_0(%arg0: i32, %arg1: i32, %arg2: i32) -> (i32, i32, i32) {
    %c0_i32 = arith.constant 0 : i32
    %c0_i32_0 = arith.constant 0 : i32
    return %arg0, %arg1, %c0_i32 : i32, i32, i32
  }
  func.func @transform_1(%arg0: i32, %arg1: i32, %arg2: i32) -> (i32, i32, i32) {
    %c0_i32 = arith.constant 0 : i32
    %c0_i32_0 = arith.constant 0 : i32
    return %arg0, %arg2, %c0_i32 : i32, i32, i32
  }
  func.func @transform_2(%arg0: i32, %arg1: i32, %arg2: i32) -> (i32, i32, i32) {
    %c0_i32 = arith.constant 0 : i32
    %c0_i32_0 = arith.constant 0 : i32
    return %arg0, %arg2, %c0_i32 : i32, i32, i32
  }
  func.func @transform_3(%arg0: i32, %arg1: i32, %arg2: i32) -> (i32, i32, i32) {
    %c0_i32 = arith.constant 0 : i32
    %c0_i32_0 = arith.constant 0 : i32
    return %arg0, %arg1, %c0_i32 : i32, i32, i32
  }
}

module attributes {stable_mosaic.version = 11 : i64} {
  func.func @_proj_kernel(%arg0: i32, %arg1: i32, %arg2: i32, %arg3: memref<16x32xf32, #tpu.memory_space<vmem>>, %arg4: memref<32x32xf32, #tpu.memory_space<vmem>>, %arg5: memref<1x32xf32, #tpu.memory_space<vmem>>, %arg6: memref<16x32xf32, #tpu.memory_space<vmem>>, %arg7: memref<16x32xf32, #tpu.memory_space<vmem>>) attributes {dimension_semantics = [#tpu.dimension_semantics<parallel>, #tpu.dimension_semantics<parallel>, #tpu.dimension_semantics<arbitrary>], iteration_bounds = array<i64: 1, 1, 1>, scalar_prefetch = 0 : i64, scratch_operands = 1 : i64, tpu.core_type = #tpu.core_type<tc>, window_params = [{transform_indices = @transform_0, window_bounds = array<i64: 16, 32>}, {transform_indices = @transform_1, window_bounds = array<i64: 32, 32>}, {transform_indices = @transform_2, window_bounds = array<i64: 1, 32>}, {transform_indices = @transform_3, window_bounds = array<i64: 16, 32>}]} {
    %c0_i32 = arith.constant 0 : i32
    %0 = arith.cmpi eq, %arg2, %c0_i32 : i32
    %1 = arith.extui %0 : i1 to i32
    %c0_i32_0 = arith.constant 0 : i32
    %2 = arith.cmpi ne, %1, %c0_i32_0 : i32
    scf.if %2 {
      %cst_10 = arith.constant 0.000000e+00 : f32
      %14 = vector.broadcast %cst_10 : f32 to vector<16x32xf32>
      %c0_11 = arith.constant 0 : index
      %c0_12 = arith.constant 0 : index
      %15 = vector.load %arg7[%c0_11, %c0_12] : memref<16x32xf32, #tpu.memory_space<vmem>>, vector<16x32xf32>
      tpu.vector_store %arg7[%c0_11, %c0_12], %14 {strides = array<i32>} : memref<16x32xf32, #tpu.memory_space<vmem>>, vector<16x32xf32>,
    } else {
    }
    %c0 = arith.constant 0 : index
    %c0_1 = arith.constant 0 : index
    %3 = vector.load %arg7[%c0, %c0_1] : memref<16x32xf32, #tpu.memory_space<vmem>>, vector<16x32xf32>
    %c0_2 = arith.constant 0 : index
    %c0_3 = arith.constant 0 : index
    %4 = vector.load %arg3[%c0_2, %c0_3] : memref<16x32xf32, #tpu.memory_space<vmem>>, vector<16x32xf32>
    %5 = arith.truncf %4 : vector<16x32xf32> to vector<16x32xbf16>
    %c0_4 = arith.constant 0 : index
    %c0_5 = arith.constant 0 : index
    %6 = vector.load %arg4[%c0_4, %c0_5] : memref<32x32xf32, #tpu.memory_space<vmem>>, vector<32x32xf32>
    %7 = arith.truncf %6 : vector<32x32xf32> to vector<32x32xbf16>
    %cst = arith.constant dense<0.000000e+00> : vector<16x32xf32>
    %8 = tpu.matmul %5, %7, %cst {dimension_numbers = #tpu.dot_dimension_numbers<[1], [0], [0], [1], [0, 0, 1, 1], [], []>} : vector<16x32xbf16>, vector<32x32xbf16>, vector<16x32xf32> -> vector<16x32xf32>
    %9 = arith.addf %3, %8 : vector<16x32xf32>
    %c0_6 = arith.constant 0 : index
    %c0_7 = arith.constant 0 : index
    %10 = vector.load %arg7[%c0_6, %c0_7] : memref<16x32xf32, #tpu.memory_space<vmem>>, vector<16x32xf32>
    tpu.vector_store %arg7[%c0_6, %c0_7], %9 {strides = array<i32>} : memref<16x32xf32, #tpu.memory_space<vmem>>, vector<16x32xf32>,
    %c0_i32_8 = arith.constant 0 : i32
    %11 = arith.cmpi eq, %arg2, %c0_i32_8 : i32
    %12 = arith.extui %11 : i1 to i32
    %c0_i32_9 = arith.constant 0 : i32
    %13 = arith.cmpi ne, %12, %c0_i32_9 : i32
    scf.if %13 {
      %c0_10 = arith.constant 0 : index
      %c0_11 = arith.constant 0 : index
      %14 = vector.load %arg7[%c0_10, %c0_11] : memref<16x32xf32, #tpu.memory_space<vmem>>, vector<16x32xf32>
      %c0_12 = arith.constant 0 : index
      %c0_13 = arith.constant 0 : index
      %15 = vector.load %arg5[%c0_12, %c0_13] : memref<1x32xf32, #tpu.memory_space<vmem>>, vector<1x32xf32>
      %16 = vector.broadcast %15 : vector<1x32xf32> to vector<16x32xf32>
      %17 = arith.addf %14, %16 : vector<16x32xf32>
      %c0_14 = arith.constant 0 : index
      %c0_15 = arith.constant 0 : index
      %18 = vector.load %arg6[%c0_14, %c0_15] : memref<16x32xf32, #tpu.memory_space<vmem>>, vector<16x32xf32>
      tpu.vector_store %arg6[%c0_14, %c0_15], %17 {strides = array<i32>} : memref<16x32xf32, #tpu.memory_space<vmem>>, vector<16x32xf32>,
    } else {
    }
    return
  }
  func.func @transform_0(%arg0: i32, %arg1: i32, %arg2: i32) -> (i32, i32) {
    %c0_i32 = arith.constant 0 : i32
    return %arg0, %arg2 : i32, i32
  }
  func.func @transform_1(%arg0: i32, %arg1: i32, %arg2: i32) -> (i32, i32) {
    %c0_i32 = arith.constant 0 : i32
    return %arg2, %arg1 : i32, i32
  }
  func.func @transform_2(%arg0: i32, %arg1: i32, %arg2: i32) -> (i32, i32) {
    %c0_i32 = arith.constant 0 : i32
    %c0_i32_0 = arith.constant 0 : i32
    return %c0_i32, %arg1 : i32, i32
  }
  func.func @transform_3(%arg0: i32, %arg1: i32, %arg2: i32) -> (i32, i32) {
    %c0_i32 = arith.constant 0 : i32
    return %arg0, %arg1 : i32, i32
  }
}

</mosaic_0001>

<llo_original>
// kernel: flash_attention.3
$region0: #{flash_attention.3}
  #allocation0 [shape = 'u32[]', space=smem, size = 0x4, offset = 0x4, fixed_abs, tag = 'smem constant byte address 0x4 - core index']
  #allocation1 [shape = 'u32[72,128]{1,0:T(1,128)}', space=vmem, size = 0x9000, scoped, tag = 'internal scratch']
  #allocation2 [shape = 'f32[16,96]{1,0:T(8,128)}', space=vmem, size = 0x2000, scoped, tag = 'scratch operand']
  %s0 = inlined_call_operand.hbm [shape: f32[16,32], index: 0, kind: input, shape index: {}]
  %s1 = inlined_call_operand.hbm [shape: f32[32,96], index: 1, kind: input, shape index: {}]
  %s2 = inlined_call_operand.vmem [shape: f32[1,96], index: 2, kind: input, shape index: {}]
  %s3 = inlined_call_operand.vmem [shape: f32[16,96], index: 3, kind: output, shape index: {}]
  %s4 = sld [smem:[#allocation0]]
  $region38: #{flash_attention.3} parent=0
    _
  %s6 = ssub.s32 1, %s4
  %s7 = scalar_select 0, %s6, %s4
  $region1: #{flash_attention.3} parent=0
    #allocation3 [shape = 'u8[8192]{0}', space=vmem, size = 0x2000, scoped, tag = 'input window, operand 0, single buffered']
    #allocation4 [shape = 's32[1]{0}', space=sflag, size = 0x4, scoped, tag = 'scoped memory for flash_attention.3']
    #allocation5 [shape = 'u8[16384]{0}', space=vmem, size = 0x4000, scoped, tag = 'input window, operand 1, single buffered']
    #allocation6 [shape = 's32[1]{0}', space=sflag, size = 0x4, scoped, tag = 'scoped memory for flash_attention.3']
    %8 = vsyncpa [#allocation4], 0
    %9 = vsyncpa [#allocation6], 0
    // Predicated region
    $region2: #{flash_attention.3} parent=1 // pred_check
      _
    $region3: #{flash_attention.3} parent=1 // pred_check_branch
      %11 = sbr.rel (0) target = $region5
    $region4: #{flash_attention.3} parent=1 // pred_region
      %13 = vsyncadd [#allocation4], 0
      %s14 = sshll.u32 %s0, 4
      %s15 = int_to_ptr.hbm [resolvable:$true] %s14
      %s16 = sshll.u32 [#allocation3], 4
      %s17 = int_to_ptr.vmem [resolvable:$true] %s16
      %22 = dma.hbm_to_vmem [thread:$0]  %s15, 256, %s17, [#allocation4], 128, 128, 8
    $region5: #{flash_attention.3} parent=1 // pred_fallthru
      _
    // Predicated region
    $region6: #{flash_attention.3} parent=1 // pred_check
      _
    $region7: #{flash_attention.3} parent=1 // pred_check_branch
      %24 = sbr.rel (0) target = $region9
    $region8: #{flash_attention.3} parent=1 // pred_region
      %26 = vsyncadd [#allocation6], 0
      %s27 = sshll.u32 %s1, 4
      %s28 = int_to_ptr.hbm [resolvable:$true] %s27
      %s29 = sshll.u32 [#allocation5], 4
      %s30 = int_to_ptr.vmem [resolvable:$true] %s29
      %35 = dma.hbm_to_vmem [thread:$0]  %s28, 512, %s30, [#allocation6], 128, 128, 8
    $region9: #{flash_attention.3} parent=1 // pred_fallthru
      _
    // Predicated region
    $region10: #{flash_attention.3} parent=1 // pred_check
      _
    $region11: #{flash_attention.3} parent=1 // pred_check_branch
      %37 = sbr.rel (0) target = $region13
    $region12: #{flash_attention.3} parent=1 // pred_region
      _
    $region13: #{flash_attention.3} parent=1 // pred_fallthru
      _
    // Predicated region
    $region14: #{flash_attention.3} parent=1 // pred_check
      _
    $region15: #{flash_attention.3} parent=1 // pred_check_branch
      %39 = sbr.rel (0) target = $region17
    $region16: #{flash_attention.3} parent=1 // pred_region
      %41 = dma.done [#allocation4], 256
    $region17: #{flash_attention.3} parent=1 // pred_fallthru
      _
    // Predicated region
    $region18: #{flash_attention.3} parent=1 // pred_check
      _
    $region19: #{flash_attention.3} parent=1 // pred_check_branch
      %43 = sbr.rel (0) target = $region21
    $region20: #{flash_attention.3} parent=1 // pred_region
      %45 = dma.done [#allocation6], 512
    $region21: #{flash_attention.3} parent=1 // pred_fallthru
      _
    %p47 = scmp.eq.s32.totalorder 0, 0
    // Predicated region
    $region22: #{flash_attention.3} parent=1 // pred_check
      %p48 = pneg %p47
    $region23: #{flash_attention.3} parent=1 // pred_check_branch
      %50 = sbr.rel (%p48) target = $region25
    $region24: #{flash_attention.3} parent=1 // pred_region
      %vm51 = vcmask 785408
      %52 = vst.msk [vmem:[#allocation2] sm:$0xff] %vm51, 0.0
      %53 = vst.msk [vmem:[#allocation2 + $0x8] sm:$0xff] %vm51, 0.0
    $region25: #{flash_attention.3} parent=1 // pred_fallthru
      _
    %v54 = vld [vmem:[#allocation2] sm:$0xff]
    %v55 = vld [vmem:[#allocation2 + $0x8] sm:$0xff]
    %v56 = vld [vmem:[#allocation3] sm:$0xff]
    %v57 = vld [vmem:[#allocation3 + $0x8] sm:$0xff]
    %v58 = vpack.c.bf16 %v57, %v56
    %v59 = vld [vmem:[#allocation5] sm:$0xff]
    %v60 = vld [vmem:[#allocation5 + $0x8] sm:$0xff]
    %v61 = vld [vmem:[#allocation5 + $0x10] sm:$0xff]
    %v62 = vld [vmem:[#allocation5 + $0x18] sm:$0xff]
    %v63 = vpack.c.bf16 %v60, %v59
    %v64 = vpack.c.bf16 %v62, %v61
    %vm65 = vcmask 261120
    %v67 = vsel %vm65, %v58, 0
    %69 = vmatpush.bf16.msra.mxu0 0
    %70 = vmatpush.bf16.msra.mxu0 0
    %71 = vmatpush.bf16.msra.mxu0 0
    %72 = vmatpush.bf16.msra.mxu0 0
    %73 = vmatpush.bf16.msra.mxu0 0
    %74 = vmatpush.bf16.msra.mxu0 0
    %75 = vmatpush.bf16.msra.mxu0 %v64
    %76 = vmatpush.bf16.msra.mxu0 %v63
    %77 = vmatmul.bf16.gmra.mxu0 %v67
    %v78 = vpop.f32.mrf.mxu0
    %v79 = vadd.f32 0.0, %v78
    %v80 = vpop.f32.mrf.mxu0
    %v81 = vadd.f32 0.0, %v80
    %82 = vdwg.mxu0
    %v83 = vadd.f32 %v54, %v79
    %v84 = vadd.f32 %v55, %v81
    %vm85 = vcmask 785408
    %86 = vst.msk [vmem:[#allocation2] sm:$0xff] %vm85, %v83
    %87 = vst.msk [vmem:[#allocation2 + $0x8] sm:$0xff] %vm85, %v84
    // Predicated region
    $region26: #{flash_attention.3} parent=1 // pred_check
      %p88 = pneg %p47
    $region27: #{flash_attention.3} parent=1 // pred_check_branch
      %90 = sbr.rel (%p88) target = $region29
    $region28: #{flash_attention.3} parent=1 // pred_region
      %v91 = vld [vmem:[#allocation2] sm:$0xff]
      %v92 = vld [vmem:[#allocation2 + $0x8] sm:$0xff]
      %v93 = vld [vmem:[%s2] sm:$0x1]
      %v95 = vperm.slane %v93, 0
      %v97 = vadd.f32 %v91, %v95
      %v98 = vadd.f32 %v92, %v95
      %99 = vst.msk [vmem:[%s3] sm:$0xff] %vm85, %v97
      %100 = vst.msk [vmem:[%s3 + $0x8] sm:$0xff] %vm85, %v98
    $region29: #{flash_attention.3} parent=1 // pred_fallthru
      _
    // Predicated region
    $region30: #{flash_attention.3} parent=1 // pred_check
      _
    $region31: #{flash_attention.3} parent=1 // pred_check_branch
      %102 = sbr.rel (0) target = $region33
    $region32: #{flash_attention.3} parent=1 // pred_region
      _
    $region33: #{flash_attention.3} parent=1 // pred_fallthru
      _
    // Predicated region
    $region34: #{flash_attention.3} parent=1 // pred_check
      _
    $region35: #{flash_attention.3} parent=1 // pred_check_branch
      %104 = sbr.rel (0) target = $region37
    $region36: #{flash_attention.3} parent=1 // pred_region
      _
    $region37: #{flash_attention.3} parent=1 // pred_fallthru
      _
    %105 = vsyncpa [#allocation4], 1
    %106 = vsyncpa [#allocation6], 1

// kernel: flash_attention.5
$region0: #{flash_attention.5}
  #allocation0 [shape = 'u32[]', space=smem, size = 0x4, offset = 0x4, fixed_abs, tag = 'smem constant byte address 0x4 - core index']
  #allocation1 [shape = 'u32[72,128]{1,0:T(1,128)}', space=vmem, size = 0x9000, scoped, tag = 'internal scratch']
  #allocation2 [shape = 'f32[16,32]{1,0:T(8,128)}', space=vmem, size = 0x2000, scoped, tag = 'scratch operand']
  %s0 = inlined_call_operand.vmem [shape: f32[16,32], index: 0, kind: input, shape index: {}]
  %s1 = inlined_call_operand.vmem [shape: f32[32,32], index: 1, kind: input, shape index: {}]
  %s2 = inlined_call_operand.vmem [shape: f32[1,32], index: 2, kind: input, shape index: {}]
  %s3 = inlined_call_operand.hbm [shape: f32[16,32], index: 3, kind: output, shape index: {}]
  %s4 = sld [smem:[#allocation0]]
  $region30: #{flash_attention.5} parent=0
    _
  %s6 = ssub.s32 1, %s4
  %s7 = scalar_select 0, %s6, %s4
  $region1: #{flash_attention.5} parent=0
    #allocation3 [shape = 'u8[8192]{0}', space=vmem, size = 0x2000, scoped, tag = 'output window, operand 0, single buffered']
    #allocation4 [shape = 's32[1]{0}', space=sflag, size = 0x4, scoped, tag = 'scoped memory for flash_attention.5']
    %8 = vsyncpa [#allocation4], 0
    // Predicated region
    $region2: #{flash_attention.5} parent=1 // pred_check
      _
    $region3: #{flash_attention.5} parent=1 // pred_check_branch
      %10 = sbr.rel (0) target = $region5
    $region4: #{flash_attention.5} parent=1 // pred_region
      _
    $region5: #{flash_attention.5} parent=1 // pred_fallthru
      _
    // Predicated region
    $region6: #{flash_attention.5} parent=1 // pred_check
      _
    $region7: #{flash_attention.5} parent=1 // pred_check_branch
      %12 = sbr.rel (0) target = $region9
    $region8: #{flash_attention.5} parent=1 // pred_region
      _
    $region9: #{flash_attention.5} parent=1 // pred_fallthru
      _
    // Predicated region
    $region10: #{flash_attention.5} parent=1 // pred_check
      _
    $region11: #{flash_attention.5} parent=1 // pred_check_branch
      %14 = sbr.rel (0) target = $region13
    $region12: #{flash_attention.5} parent=1 // pred_region
      _
    $region13: #{flash_attention.5} parent=1 // pred_fallthru
      _
    %p16 = scmp.eq.s32.totalorder 0, 0
    // Predicated region
    $region14: #{flash_attention.5} parent=1 // pred_check
      %p17 = pneg %p16
    $region15: #{flash_attention.5} parent=1 // pred_check_branch
      %19 = sbr.rel (%p17) target = $region17
    $region16: #{flash_attention.5} parent=1 // pred_region
      %vm20 = vcmask 261120
      %21 = vst.msk [vmem:[#allocation2] sm:$0xff] %vm20, 0.0
      %22 = vst.msk [vmem:[#allocation2 + $0x8] sm:$0xff] %vm20, 0.0
    $region17: #{flash_attention.5} parent=1 // pred_fallthru
      _
    %v23 = vld [vmem:[#allocation2] sm:$0xff]
    %v24 = vld [vmem:[#allocation2 + $0x8] sm:$0xff]
    %v25 = vld [vmem:[%s0] sm:$0xff]
    %v26 = vld [vmem:[%s0 + $0x8] sm:$0xff]
    %v27 = vpack.c.bf16 %v26, %v25
    %v28 = vld [vmem:[%s1] sm:$0xff]
    %v29 = vld [vmem:[%s1 + $0x8] sm:$0xff]
    %v30 = vld [vmem:[%s1 + $0x10] sm:$0xff]
    %v31 = vld [vmem:[%s1 + $0x18] sm:$0xff]
    %v32 = vpack.c.bf16 %v29, %v28
    %v33 = vpack.c.bf16 %v31, %v30
    %vm34 = vcmask 261120
    %v36 = vsel %vm34, %v27, 0
    %38 = vmatpush.bf16.msra.mxu0 0
    %39 = vmatpush.bf16.msra.mxu0 0
    %40 = vmatpush.bf16.msra.mxu0 0
    %41 = vmatpush.bf16.msra.mxu0 0
    %42 = vmatpush.bf16.msra.mxu0 0
    %43 = vmatpush.bf16.msra.mxu0 0
    %44 = vmatpush.bf16.msra.mxu0 %v33
    %45 = vmatpush.bf16.msra.mxu0 %v32
    %46 = vmatmul.bf16.gmra.mxu0 %v36
    %v47 = vpop.f32.mrf.mxu0
    %v48 = vadd.f32 0.0, %v47
    %v49 = vpop.f32.mrf.mxu0
    %v50 = vadd.f32 0.0, %v49
    %51 = vdwg.mxu0
    %v52 = vadd.f32 %v23, %v48
    %v53 = vadd.f32 %v24, %v50
    %54 = vst.msk [vmem:[#allocation2] sm:$0xff] %vm34, %v52
    %55 = vst.msk [vmem:[#allocation2 + $0x8] sm:$0xff] %vm34, %v53
    // Predicated region
    $region18: #{flash_attention.5} parent=1 // pred_check
      %p56 = pneg %p16
    $region19: #{flash_attention.5} parent=1 // pred_check_branch
      %58 = sbr.rel (%p56) target = $region21
    $region20: #{flash_attention.5} parent=1 // pred_region
      %v59 = vld [vmem:[#allocation2] sm:$0xff]
      %v60 = vld [vmem:[#allocation2 + $0x8] sm:$0xff]
      %v61 = vld [vmem:[%s2] sm:$0x1]
      %v63 = vperm.slane %v61, 0
      %v65 = vadd.f32 %v59, %v63
      %v66 = vadd.f32 %v60, %v63
      %67 = vst.msk [vmem:[#allocation3] sm:$0xff] %vm34, %v65
      %68 = vst.msk [vmem:[#allocation3 + $0x8] sm:$0xff] %vm34, %v66
    $region21: #{flash_attention.5} parent=1 // pred_fallthru
      _
    // Predicated region
    $region22: #{flash_attention.5} parent=1 // pred_check
      _
    $region23: #{flash_attention.5} parent=1 // pred_check_branch
      %70 = sbr.rel (0) target = $region25
    $region24: #{flash_attention.5} parent=1 // pred_region
      %72 = vsyncadd [#allocation4], 0
      %s73 = sshll.u32 [#allocation3], 4
      %s74 = int_to_ptr.vmem [resolvable:$true] %s73
      %s75 = sshll.u32 %s3, 4
      %s76 = int_to_ptr.hbm [resolvable:$true] %s75
      %81 = dma.vmem_to_hbm [thread:$0]  %s74, 256, %s76, [#allocation4], 128, 128, 8
    $region25: #{flash_attention.5} parent=1 // pred_fallthru
      _
    // Predicated region
    $region26: #{flash_attention.5} parent=1 // pred_check
      _
    $region27: #{flash_attention.5} parent=1 // pred_check_branch
      %83 = sbr.rel (0) target = $region29
    $region28: #{flash_attention.5} parent=1 // pred_region
      %85 = dma.done [#allocation4], 256
    $region29: #{flash_attention.5} parent=1 // pred_fallthru
      _
    %86 = vsyncpa [#allocation4], 1

// kernel: flash_attention.4
$region0: #{flash_attention.4}
  #allocation0 [shape = 'u32[]', space=smem, size = 0x4, offset = 0x4, fixed_abs, tag = 'smem constant byte address 0x4 - core index']
  #allocation1 [shape = 'u32[72,128]{1,0:T(1,128)}', space=vmem, size = 0x9000, scoped, tag = 'internal scratch']
  #allocation2 [shape = 'f32[8,1]{1,0:T(8,128)}', space=vmem, size = 0x1000, scoped, tag = 'scratch operand']
  #allocation3 [shape = 'f32[8,1]{1,0:T(8,128)}', space=vmem, size = 0x1000, scoped, tag = 'scratch operand']
  #allocation4 [shape = 'f32[8,8]{1,0:T(8,128)}', space=vmem, size = 0x1000, scoped, tag = 'scratch operand']
  %s0 = inlined_call_operand.vmem [shape: f32[8,8,8], index: 0, kind: input, shape index: {}]
  %s1 = inlined_call_operand.vmem [shape: f32[8,8,8], index: 1, kind: input, shape index: {}]
  %s2 = inlined_call_operand.vmem [shape: f32[8,8,8], index: 2, kind: input, shape index: {}]
  %s3 = inlined_call_operand.vmem [shape: f32[8,8,8], index: 3, kind: output, shape index: {}]
  %s4 = sld [smem:[#allocation0]]
  $region53: #{flash_attention.4} parent=0
    _
  %s6 = ssub.s32 1, %s4
  %s7 = scalar_select 0, %s6, %s4
  loop: start=0, step=1, limit=10
  $region2: #{flash_attention.4} parent=0 // loop_pre_header
    _
  $region3: #{flash_attention.4} parent=0 // loop_header
    %s9 = sphi 0, %s13
    %p10 = scmp.ge.s32.totalorder %s9, 10
    %s16 = sphi 0, %s35
    %s17 = sphi 0, %s31
    %s18 = sphi 0, %s27
    %s19 = sphi 0, %s16
    %s20 = sphi 0, %s17
    %s21 = sphi 0, %s18
    %s22 = sphi 0, %s19
    %s23 = sphi 0, %s20
    %s24 = sphi 0, %s21
    %s40 = sphi 0, %s42
    %s43 = sphi 0, %s40
    %s44 = sphi 0, %s43
    %s60 = sphi 0, %s44
    %s68 = sphi 0, %s70
    %s71 = sphi 0, %s68
    %s72 = sphi 0, %s71
    %s88 = sphi 0, %s72
    %s96 = sphi 0, %s98
    %s99 = sphi 0, %s96
    %s100 = sphi 0, %s99
    %s116 = sphi 0, %s100
    %s124 = sphi 0, %s126
    %s127 = sphi 0, %s124
    %s128 = sphi 0, %s127
    %s144 = sphi 0, %s128
  $region4: #{flash_attention.4} parent=0 // loop_header_branch
    %12 = sbr.rel (%p10) target = $region8
  $region5: #{flash_attention.4} parent=0 // loop_body
    %s14 = ssub.s32 %s9, 1
    %s15 = ssub.s32 %s9, 2
    %s25 = sadd.s32 1, %s18
    %p26 = scmp.ge.s32.totalorder %s25, 1
    %s27 = scalar_select %p26, 0, %s25
    %s28 = sadd.s32 1, %s17
    %s29 = scalar_select %p26, %s28, %s17
    %p30 = scmp.ge.s32.totalorder %s29, 1
    %s31 = scalar_select %p30, 0, %s29
    %s32 = sadd.s32 1, %s16
    %s33 = scalar_select %p30, %s32, %s16
    %p34 = scmp.ge.s32.totalorder %s33, 8
    %s35 = scalar_select %p34, 0, %s33
    %s36 = ssub.s32 %s16, %s35
    %s37 = ssub.s32 %s17, %s31
    %s38 = sor.u32 %s36, %s37
    %p39 = scmp.eq.s32.totalorder %s38, 0
    %s41 = sadd.s32 %s40, 1
    %s42 = scalar_select %p39, %s40, %s41
    %p45 = pneg %p39
    %p46 = scmp.eq.s32.totalorder %s9, 7
    %p47 = por %p45, %p46
    %p48 = scmp.ne.s32.totalorder %s40, %s43
    %p49 = scmp.eq.s32.totalorder %s9, 0
    %p50 = por %p48, %p49
    %p51 = scmp.ne.s32.totalorder %s40, %s43
    %p52 = scmp.eq.s32.totalorder %s14, 7
    %p53 = por %p51, %p52
    %p54 = scmp.ne.s32.totalorder %s43, %s44
    %p55 = scmp.eq.s32.totalorder %s14, 0
    %p56 = por %p54, %p55
    %p57 = scmp.ne.s32.totalorder %s43, %s44
    %p58 = scmp.eq.s32.totalorder %s15, 7
    %p59 = por %p57, %p58
    %p61 = scmp.ne.s32.totalorder %s44, %s60
    %p62 = scmp.eq.s32.totalorder %s15, 0
    %p63 = por %p61, %p62
    %s64 = ssub.s32 %s16, %s35
    %s65 = ssub.s32 %s18, %s27
    %s66 = sor.u32 %s64, %s65
    %p67 = scmp.eq.s32.totalorder %s66, 0
    %s69 = sadd.s32 %s68, 1
    %s70 = scalar_select %p67, %s68, %s69
    %p73 = pneg %p67
    %p74 = scmp.eq.s32.totalorder %s9, 7
    %p75 = por %p73, %p74
    %p76 = scmp.ne.s32.totalorder %s68, %s71
    %p77 = scmp.eq.s32.totalorder %s9, 0
    %p78 = por %p76, %p77
    %p79 = scmp.ne.s32.totalorder %s68, %s71
    %p80 = scmp.eq.s32.totalorder %s14, 7
    %p81 = por %p79, %p80
    %p82 = scmp.ne.s32.totalorder %s71, %s72
    %p83 = scmp.eq.s32.totalorder %s14, 0
    %p84 = por %p82, %p83
    %p85 = scmp.ne.s32.totalorder %s71, %s72
    %p86 = scmp.eq.s32.totalorder %s15, 7
    %p87 = por %p85, %p86
    %p89 = scmp.ne.s32.totalorder %s72, %s88
    %p90 = scmp.eq.s32.totalorder %s15, 0
    %p91 = por %p89, %p90
    %s92 = ssub.s32 %s16, %s35
    %s93 = ssub.s32 %s18, %s27
    %s94 = sor.u32 %s92, %s93
    %p95 = scmp.eq.s32.totalorder %s94, 0
    %s97 = sadd.s32 %s96, 1
    %s98 = scalar_select %p95, %s96, %s97
    %p101 = pneg %p95
    %p102 = scmp.eq.s32.totalorder %s9, 7
    %p103 = por %p101, %p102
    %p104 = scmp.ne.s32.totalorder %s96, %s99
    %p105 = scmp.eq.s32.totalorder %s9, 0
    %p106 = por %p104, %p105
    %p107 = scmp.ne.s32.totalorder %s96, %s99
    %p108 = scmp.eq.s32.totalorder %s14, 7
    %p109 = por %p107, %p108
    %p110 = scmp.ne.s32.totalorder %s99, %s100
    %p111 = scmp.eq.s32.totalorder %s14, 0
    %p112 = por %p110, %p111
    %p113 = scmp.ne.s32.totalorder %s99, %s100
    %p114 = scmp.eq.s32.totalorder %s15, 7
    %p115 = por %p113, %p114
    %p117 = scmp.ne.s32.totalorder %s100, %s116
    %p118 = scmp.eq.s32.totalorder %s15, 0
    %p119 = por %p117, %p118
    %s120 = ssub.s32 %s16, %s35
    %s121 = ssub.s32 %s17, %s31
    %s122 = sor.u32 %s120, %s121
    %p123 = scmp.eq.s32.totalorder %s122, 0
    %s125 = sadd.s32 %s124, 1
    %s126 = scalar_select %p123, %s124, %s125
    %p129 = pneg %p123
    %p130 = scmp.eq.s32.totalorder %s9, 7
    %p131 = por %p129, %p130
    %p132 = scmp.ne.s32.totalorder %s124, %s127
    %p133 = scmp.eq.s32.totalorder %s9, 0
    %p134 = por %p132, %p133
    %p135 = scmp.ne.s32.totalorder %s124, %s127
    %p136 = scmp.eq.s32.totalorder %s14, 7
    %p137 = por %p135, %p136
    %p138 = scmp.ne.s32.totalorder %s127, %s128
    %p139 = scmp.eq.s32.totalorder %s14, 0
    %p140 = por %p138, %p139
    %p141 = scmp.ne.s32.totalorder %s127, %s128
    %p142 = scmp.eq.s32.totalorder %s15, 7
    %p143 = por %p141, %p142
    %p145 = scmp.ne.s32.totalorder %s128, %s144
    %p146 = scmp.eq.s32.totalorder %s15, 0
    %p147 = por %p145, %p146
    %p148 = scmp.le.s32.totalorder 1, %s9
    %p149 = scmp.lt.s32.totalorder %s9, 9
    %p150 = pnand %p148, %p149
    %p151 = pneg %p150
    // Predicated region
    $region9: #{flash_attention.4} parent=5 // pred_check
      _
    $region10: #{flash_attention.4} parent=5 // pred_check_branch
      %153 = sbr.rel (%p150) target = $region12
    $region11: #{flash_attention.4} parent=5 // pred_region
      %s154 = ssub.s32 %s9, 1
    $region12: #{flash_attention.4} parent=5 // pred_fallthru
      _
    %p155 = scmp.lt.s32.totalorder %s9, 8
    // Predicated region
    $region13: #{flash_attention.4} parent=5 // pred_check
      %p156 = pneg %p155
    $region14: #{flash_attention.4} parent=5 // pred_check_branch
      %158 = sbr.rel (%p156) target = $region16
    $region15: #{flash_attention.4} parent=5 // pred_region
      // Predicated region
      $region17: #{flash_attention.4} parent=15 // pred_check
        %p159 = pneg %p50
      $region18: #{flash_attention.4} parent=15 // pred_check_branch
        %161 = sbr.rel (%p159) target = $region20
      $region19: #{flash_attention.4} parent=15 // pred_region
        %p162 = scmp.lt.s32.totalorder %s16, 7
        %s163 = scalar_select %p162, %s16, 7
        %p164 = scmp.lt.s32.totalorder %s17, 0
        %s165 = scalar_select %p164, %s17, 0
        %s166 = sadd.s32 %s165, %s163
        %s167 = smul.addr %s166, 8
        %s168 = scalar_lea.vmem %s0, %s167
      $region20: #{flash_attention.4} parent=15 // pred_fallthru
        _
      // Predicated region
      $region21: #{flash_attention.4} parent=15 // pred_check
        %p169 = pneg %p78
      $region22: #{flash_attention.4} parent=15 // pred_check_branch
        %171 = sbr.rel (%p169) target = $region24
      $region23: #{flash_attention.4} parent=15 // pred_region
        %p172 = scmp.lt.s32.totalorder %s16, 7
        %s173 = scalar_select %p172, %s16, 7
        %p174 = scmp.lt.s32.totalorder %s18, 0
        %s175 = scalar_select %p174, %s18, 0
        %s176 = sadd.s32 %s175, %s173
        %s177 = smul.addr %s176, 8
        %s178 = scalar_lea.vmem %s1, %s177
      $region24: #{flash_attention.4} parent=15 // pred_fallthru
        _
      // Predicated region
      $region25: #{flash_attention.4} parent=15 // pred_check
        %p179 = pneg %p106
      $region26: #{flash_attention.4} parent=15 // pred_check_branch
        %181 = sbr.rel (%p179) target = $region28
      $region27: #{flash_attention.4} parent=15 // pred_region
        %p182 = scmp.lt.s32.totalorder %s16, 7
        %s183 = scalar_select %p182, %s16, 7
        %p184 = scmp.lt.s32.totalorder %s18, 0
        %s185 = scalar_select %p184, %s18, 0
        %s186 = sadd.s32 %s185, %s183
        %s187 = smul.addr %s186, 8
        %s188 = scalar_lea.vmem %s2, %s187
      $region28: #{flash_attention.4} parent=15 // pred_fallthru
        _
    $region16: #{flash_attention.4} parent=5 // pred_fallthru
      _
    %p189 = scmp.le.s32.totalorder 1, %s9
    %p190 = scmp.lt.s32.totalorder %s9, 9
    %p191 = pnand %p189, %p190
    %p192 = pneg %p191
    // Predicated region
    $region29: #{flash_attention.4} parent=5 // pred_check
      _
    $region30: #{flash_attention.4} parent=5 // pred_check_branch
      %194 = sbr.rel (%p191) target = $region32
    $region31: #{flash_attention.4} parent=5 // pred_region
      %s195 = ssub.s32 %s9, 1
      %p196 = scmp.lt.s32.totalorder %s19, 7
      %s197 = scalar_select %p196, %s19, 7
      %p198 = scmp.lt.s32.totalorder %s20, 0
      %s199 = scalar_select %p198, %s20, 0
      %s200 = sadd.s32 %s199, %s197
      %s201 = smul.addr %s200, 8
      %s202 = scalar_lea.vmem %s0, %s201
      %p203 = pneg %p56
      %p204 = pneg %p53
      %p205 = scmp.lt.s32.totalorder %s19, 7
      %s206 = scalar_select %p205, %s19, 7
      %p207 = scmp.lt.s32.totalorder %s21, 0
      %s208 = scalar_select %p207, %s21, 0
      %s209 = sadd.s32 %s208, %s206
      %s210 = smul.addr %s209, 8
      %s211 = scalar_lea.vmem %s1, %s210
      %p212 = pneg %p84
      %p213 = pneg %p81
      %p214 = scmp.lt.s32.totalorder %s19, 7
      %s215 = scalar_select %p214, %s19, 7
      %p216 = scmp.lt.s32.totalorder %s21, 0
      %s217 = scalar_select %p216, %s21, 0
      %s218 = sadd.s32 %s217, %s215
      %s219 = smul.addr %s218, 8
      %s220 = scalar_lea.vmem %s2, %s219
      %p221 = pneg %p112
      %p222 = pneg %p109
      %p223 = pneg %p140
      %p224 = pneg %p137
      %p225 = scmp.lt.s32.totalorder %s19, 7
      %s226 = scalar_select %p225, %s19, 7
      %p227 = scmp.lt.s32.totalorder %s20, 0
      %s228 = scalar_select %p227, %s20, 0
      %s229 = sadd.s32 %s228, %s226
      %s230 = smul.addr %s229, 8
      %s231 = scalar_lea.vmem %s3, %s230
      %p232 = scmp.lt.s32.totalorder %s19, 7
      %s233 = scalar_select %p232, %s19, 7
      %p234 = scmp.lt.s32.totalorder %s20, 0
      %s235 = scalar_select %p234, %s20, 0
      %s236 = sadd.s32 %s235, %s233
      %s237 = smul.addr %s236, 8
      %s238 = scalar_lea.vmem %s0, %s237
      %p239 = scmp.lt.s32.totalorder %s19, 7
      %s240 = scalar_select %p239, %s19, 7
      %p241 = scmp.lt.s32.totalorder %s21, 0
      %s242 = scalar_select %p241, %s21, 0
      %s243 = sadd.s32 %s242, %s240
      %s244 = smul.addr %s243, 8
      %s245 = scalar_lea.vmem %s1, %s244
      %p246 = scmp.lt.s32.totalorder %s19, 7
      %s247 = scalar_select %p246, %s19, 7
      %p248 = scmp.lt.s32.totalorder %s21, 0
      %s249 = scalar_select %p248, %s21, 0
      %s250 = sadd.s32 %s249, %s247
      %s251 = smul.addr %s250, 8
      %s252 = scalar_lea.vmem %s2, %s251
      %p253 = scmp.lt.s32.totalorder %s19, 7
      %s254 = scalar_select %p253, %s19, 7
      %p255 = scmp.lt.s32.totalorder %s20, 0
      %s256 = scalar_select %p255, %s20, 0
      %s257 = sadd.s32 %s256, %s254
      %s258 = smul.addr %s257, 8
      %s259 = scalar_lea.vmem %s3, %s258
      %p261 = scmp.eq.s32.totalorder %s21, 0
      // Predicated region
      $region33: #{flash_attention.4} parent=31 // pred_check
        %p262 = pneg %p261
      $region34: #{flash_attention.4} parent=31 // pred_check_branch
        %264 = sbr.rel (%p262) target = $region36
      $region35: #{flash_attention.4} parent=31 // pred_region
        %vm265 = vcmask 7168
        %266 = vst.msk [vmem:[#allocation2] sm:$0xff] %vm265, -inf
        %267 = vst.msk [vmem:[#allocation3] sm:$0xff] %vm265, 0.0
        %vm268 = vcmask 64512
        %269 = vst.msk [vmem:[#allocation4] sm:$0xff] %vm268, 0.0
      $region36: #{flash_attention.4} parent=31 // pred_fallthru
        _
      %v270 = vld [vmem:[%s238] sm:$0xff]
      %v271 = vmul.f32 %v270, 0.35355338
      %v272 = vpack.c.bf16 %v271, %v271
      %v273 = vld [vmem:[%s245] sm:$0xff]
      %v274 = vpack.c.bf16 %v273, %v273
      %vm275 = vcmask 64512
      %v277 = vsel %vm275, %v272, 0
      %v280 = vsel %vm275, %v274, 0
      %282 = vmatpush.bf16.xpose.msra.mxu0 0
      %283 = vmatpush.bf16.xpose.msra.mxu0 0
      %284 = vmatpush.bf16.xpose.msra.mxu0 0
      %285 = vmatpush.bf16.xpose.msra.mxu0 0
      %286 = vmatpush.bf16.xpose.msra.mxu0 0
      %287 = vmatpush.bf16.xpose.msra.mxu0 0
      %288 = vmatpush.bf16.xpose.msra.mxu0 0
      %289 = vmatpush.bf16.xpose.msra.mxu0 %v280
      %290 = vmatmul.bf16.gmra.mxu0 %v277
      %v291 = vpop.f32.mrf.mxu0
      %v292 = vadd.f32 0.0, %v291
      %v293 = vpop.f32.mrf.mxu0
      %294 = vdwg.mxu0
      %v295 = vld [vmem:[#allocation2] sm:$0xff]
      %v296 = vsel %vm275, %v292, -inf
      %297 = vmax.xlane.f32.xlu0 %v296
      %v298 = vpop.xlane.xlu0 %297
      %v299 = vmax.f32 %v295, %v298
      %v300 = vsub.f32 %v295, %v299
      %v301 = vmul.f32 %v300, 1.442695
      %v302 = vpow.pop %v301
      %304 = vset.pattern.permute.xlu0 0
      %305 = vperm.xlu0 %304, %v299
      %v306 = vpop.permute.xlu0 %305
      %v308 = vsub.f32 %v292, %v306
      %v309 = vmul.f32 %v308, 1.442695
      %v310 = vpow.pop %v309
      %v311 = vld [vmem:[#allocation3] sm:$0xff]
      %v312 = vmul.f32 %v302, %v311
      %v313 = vsel %vm275, %v310, 0.0
      %314 = vadd.xlane.f32.xlu0 %v313
      %v315 = vpop.xlane.xlu0 %314
      %v316 = vadd.f32 %v312, %v315
      %vm317 = vcmask 7168
      %318 = vst.msk [vmem:[#allocation3] sm:$0xff] %vm317, %v316
      %v319 = vld [vmem:[#allocation4] sm:$0xff]
      %321 = vset.pattern.permute.xlu0 0
      %322 = vperm.xlu0 %321, %v302
      %v323 = vpop.permute.xlu0 %322
      %v325 = vmul.f32 %v323, %v319
      %v326 = vpack.c.bf16 %v310, %v310
      %v327 = vld [vmem:[%s252] sm:$0xff]
      %v328 = vpack.c.bf16 %v327, %v327
      %v330 = vsel %vm275, %v326, 0
      %vm332 = vcmask 1043456
      %v334 = vsel %vm332, %v328, 0
      %336 = vmatpush.bf16.msra.mxu0 0
      %337 = vmatpush.bf16.msra.mxu0 0
      %338 = vmatpush.bf16.msra.mxu0 0
      %339 = vmatpush.bf16.msra.mxu0 0
      %340 = vmatpush.bf16.msra.mxu0 0
      %341 = vmatpush.bf16.msra.mxu0 0
      %342 = vmatpush.bf16.msra.mxu0 0
      %343 = vmatpush.bf16.msra.mxu0 %v334
      %344 = vmatmul.bf16.gmra.mxu0 %v330
      %v345 = vpop.f32.mrf.mxu0
      %v346 = vadd.f32 0.0, %v345
      %v347 = vpop.f32.mrf.mxu0
      %348 = vdwg.mxu0
      %v349 = vadd.f32 %v325, %v346
      %350 = vst.msk [vmem:[#allocation4] sm:$0xff] %vm275, %v349
      %351 = vst.msk [vmem:[#allocation2] sm:$0xff] %vm317, %v299
      // Predicated region
      $region37: #{flash_attention.4} parent=31 // pred_check
        %p352 = pneg %p261
      $region38: #{flash_attention.4} parent=31 // pred_check_branch
        %354 = sbr.rel (%p352) target = $region40
      $region39: #{flash_attention.4} parent=31 // pred_region
        %v355 = vld [vmem:[#allocation3] sm:$0xff]
        %v356 = vrcp.pop %v355
        %v357 = vld [vmem:[#allocation4] sm:$0xff]
        %359 = vset.pattern.permute.xlu0 0
        %360 = vperm.xlu0 %359, %v356
        %v361 = vpop.permute.xlu0 %360
        %v363 = vmul.f32 %v357, %v361
        %364 = vst.msk [vmem:[%s259] sm:$0xff] %vm275, %v363
      $region40: #{flash_attention.4} parent=31 // pred_fallthru
        _
      %p365 = scmp.lt.s32.totalorder %s19, 7
      %s366 = scalar_select %p365, %s19, 7
      %p367 = scmp.lt.s32.totalorder %s20, 0
      %s368 = scalar_select %p367, %s20, 0
      %s369 = sadd.s32 %s368, %s366
      %s370 = smul.addr %s369, 8
      %s371 = scalar_lea.vmem %s3, %s370
      // Predicated region
      $region41: #{flash_attention.4} parent=31 // pred_check
        %p372 = pneg %p137
      $region42: #{flash_attention.4} parent=31 // pred_check_branch
        %374 = sbr.rel (%p372) target = $region44
      $region43: #{flash_attention.4} parent=31 // pred_region
        _
      $region44: #{flash_attention.4} parent=31 // pred_fallthru
        _
    $region32: #{flash_attention.4} parent=5 // pred_fallthru
      _
    %p375 = scmp.le.s32.totalorder 2, %s9
    // Predicated region
    $region45: #{flash_attention.4} parent=5 // pred_check
      %p376 = pneg %p375
    $region46: #{flash_attention.4} parent=5 // pred_check_branch
      %378 = sbr.rel (%p376) target = $region48
    $region47: #{flash_attention.4} parent=5 // pred_region
      %s379 = ssub.s32 %s9, 2
      // Predicated region
      $region49: #{flash_attention.4} parent=47 // pred_check
        %p380 = pneg %p143
      $region50: #{flash_attention.4} parent=47 // pred_check_branch
        %382 = sbr.rel (%p380) target = $region52
      $region51: #{flash_attention.4} parent=47 // pred_region
        %p383 = scmp.lt.s32.totalorder %s22, 7
        %s384 = scalar_select %p383, %s22, 7
        %p385 = scmp.lt.s32.totalorder %s23, 0
        %s386 = scalar_select %p385, %s23, 0
        %s387 = sadd.s32 %s386, %s384
        %s388 = smul.addr %s387, 8
        %s389 = scalar_lea.vmem %s3, %s388
      $region52: #{flash_attention.4} parent=47 // pred_fallthru
        _
    $region48: #{flash_attention.4} parent=5 // pred_fallthru
      _
  $region6: #{flash_attention.4} parent=0 // loop_footer
    %s13 = sadd.s32 1, %s9
  $region7: #{flash_attention.4} parent=0 // loop_footer_branch
    %8 = sbr.rel target = $region3
  $region8: #{flash_attention.4} parent=0 // loop_exit
    _

</llo_original>
